<compile_context>
chip_gen: v7x
topology: tpu7x:2x2x1
jax: 0.10.0
libtpu: 0.0.40
codegen_flags: <defaults>
</compile_context>

<pallas_src>
import functools
import math

import jax
import jax.numpy as jnp
from jax.experimental import pallas as pl
from jax.experimental.pallas import tpu as pltpu


def _round_up(x, m):
    return ((x + m - 1) // m) * m


def _pad2(a, rows, cols):
    pr, pc = rows - a.shape[0], cols - a.shape[1]
    if pr or pc:
        a = jnp.pad(a, ((0, pr), (0, pc)))
    return a


def _vmem_capacity_bytes():
    try:
        return int(pltpu.get_tpu_info().vmem_capacity_bytes)
    except Exception:
        return 64 * 1024 * 1024  # conservative (v7x per-TensorCore)


# ------------------------------ kernels ------------------------------------


def _midpu_kernel(x_ref, w_ref, pt_ref, mid_ref, acc_ref, *, compute_dtype):
    """midpu[m_tile] = sum_n pt[m_tile, n_tile] @ (x[n_tile] @ W)."""
    n = pl.program_id(1)

    @pl.when(n == 0)
    def _():
        acc_ref[...] = jnp.zeros_like(acc_ref)

    # support tile for this N slab: (TN, F_out_p), f32 accumulation on the MXU.
    support = jnp.dot(x_ref[...].astype(compute_dtype),
                      w_ref[...].astype(compute_dtype),
                      preferred_element_type=jnp.float32)
    acc_ref[...] += jnp.dot(pt_ref[...].astype(compute_dtype),
                            support.astype(compute_dtype),
                            preferred_element_type=jnp.float32)

    @pl.when(n == pl.num_programs(1) - 1)
    def _():
        mid_ref[...] = acc_ref[...].astype(mid_ref.dtype)


def _output_kernel(*refs, add_bias, compute_dtype):
    """out[p_tile] = pd[p_tile] @ midpu (+ bias)."""
    if add_bias:
        pd_ref, mid_ref, b_ref, out_ref = refs
    else:
        pd_ref, mid_ref, out_ref = refs
        b_ref = None

    out = jnp.dot(pd_ref[...].astype(compute_dtype), mid_ref[...],
                  preferred_element_type=jnp.float32)
    if add_bias:
        out = out + b_ref[...]
    out_ref[...] = out.astype(out_ref.dtype)


# ------------------------------ wrapper -------------------------------------


def _gcn_forward(x_p, w_p, pt_p, pd_p, b_p, cfg, use_buffered):
    (TM, TN, TP, pd_bufs, M_p, N_p, P_p, F_in_p, F_out_p, cd,
     vmem_limit) = cfg
    add_bias = b_p is not None
    cd_bytes = jnp.dtype(cd).itemsize

    def spec(shape, index_map, buffers=None):
        # Explicit buffer count (1 = single-buffer constant blocks, 3 = deeper
        # prefetch for streamed blocks); falls back to default double-buffering
        # if this jax build does not support pipeline_mode.
        if use_buffered and buffers is not None and hasattr(pl, "Buffered"):
            try:
                return pl.BlockSpec(shape, index_map,
                                    pipeline_mode=pl.Buffered(buffers))
            except TypeError:
                pass
        return pl.BlockSpec(shape, index_map)

    # ---- call A: midpu = pt @ (x @ W) ----------------------------------
    mid = pl.pallas_call(
        functools.partial(_midpu_kernel, compute_dtype=cd),
        out_shape=jax.ShapeDtypeStruct((M_p, F_out_p), cd),
        grid_spec=pltpu.PrefetchScalarGridSpec(
            num_scalar_prefetch=0,
            grid=(M_p // TM, N_p // TN),
            in_specs=[
                spec((TN, F_in_p), lambda m, n: (n, 0)),              # x
                spec((F_in_p, F_out_p), lambda m, n: (0, 0), buffers=1),  # W
                spec((TM, TN), lambda m, n: (m, n)),                  # pt
            ],
            out_specs=spec((TM, F_out_p), lambda m, n: (m, 0)),
            scratch_shapes=[pltpu.VMEM((TM, F_out_p), jnp.float32)],
        ),
        compiler_params=pltpu.CompilerParams(
            dimension_semantics=("parallel", "arbitrary"),
            vmem_limit_bytes=vmem_limit,
        ),
        cost_estimate=pl.CostEstimate(
            flops=int(2 * (M_p // TM) * N_p * F_in_p * F_out_p
                      + 2 * M_p * N_p * F_out_p),
            transcendentals=0,
            bytes_accessed=int((M_p // TM) * x_p.size * x_p.dtype.itemsize
                               + w_p.size * w_p.dtype.itemsize
                               + pt_p.size * pt_p.dtype.itemsize
                               + M_p * F_out_p * cd_bytes),
        ),
    )(x_p, w_p, pt_p)

    # ---- call B: out = pd @ midpu (+ bias) ------------------------------
    operands = [pd_p, mid]
    in_specs = [
        spec((TP, M_p), lambda p: (p, 0), buffers=pd_bufs),           # pd
        spec((M_p, F_out_p), lambda p: (0, 0), buffers=1),            # midpu
    ]
    if add_bias:
        operands.append(b_p)
        in_specs.append(spec((1, F_out_p), lambda p: (0, 0), buffers=1))

    out_p = pl.pallas_call(
        functools.partial(_output_kernel, add_bias=add_bias, compute_dtype=cd),
        out_shape=jax.ShapeDtypeStruct((P_p, F_out_p), jnp.float32),
        grid_spec=pltpu.PrefetchScalarGridSpec(
            num_scalar_prefetch=0,
            grid=(P_p // TP,),
            in_specs=in_specs,
            out_specs=pl.BlockSpec((TP, F_out_p), lambda p: (p, 0)),
        ),
        compiler_params=pltpu.CompilerParams(
            dimension_semantics=("parallel",),
            vmem_limit_bytes=vmem_limit,
        ),
        cost_estimate=pl.CostEstimate(
            flops=int(2 * P_p * M_p * F_out_p),
            transcendentals=0,
            bytes_accessed=int(pd_p.size * pd_p.dtype.itemsize
                               + M_p * F_out_p * cd_bytes
                               + P_p * F_out_p * 4),
        ),
    )(*operands)
    return out_p


def tuple_adj_graph_convolution(x, weight, pt, pd, bias=None, *,
                                compute_dtype=jnp.bfloat16,
                                block_m=512, block_n=512, block_p=1024):
    """Pallas implementation of TupleAdj_GraphConvolution.forward.

    x:      [N, F_in]      float32
    weight: [F_in, F_out]  float32
    pt:     [M, N]         dense representation of the sparse tuple adjacency
    pd:     [P, M]
    bias:   [F_out] or None
    returns [P, F_out]     float32
    """
    N, F_in = x.shape
    F_in_w, F_out = weight.shape
    M, N_pt = pt.shape
    P, M_pd = pd.shape
    assert F_in_w == F_in and N_pt == N and M_pd == M

    cd = compute_dtype
    cd_bytes = jnp.dtype(cd).itemsize
    x_bytes = x.dtype.itemsize
    w_bytes = weight.dtype.itemsize
    pt_bytes = pt.dtype.itemsize
    pd_bytes = pd.dtype.itemsize

    # Generation-aware VMEM budgeting.
    cap = _vmem_capacity_bytes()
    vmem_limit = max(32 * 1024 * 1024, min(int(cap * 0.85), 112 * 1024 * 1024))
    budget = int(vmem_limit * 0.6)   # per-call user-block budget (headroom left)

    # Lane-dense, (8,128)-aligned padded feature dims.
    F_in_p = _round_up(F_in, 128)
    F_out_p = _round_up(F_out, 128)

    # ---- tile sizes for call A (midpu), shrink until the footprint fits ----
    TM = min(block_m, _round_up(M, 128))
    TN = min(block_n, _round_up(N, 128))

    def _fit_a(tm, tn):
        return (2 * tn * F_in_p * x_bytes        # x tiles (double-buffered)
                + F_in_p * F_out_p * w_bytes     # W (single-buffered)
                + 2 * tm * tn * pt_bytes         # pt tiles
                + tm * F_out_p * 4               # f32 accumulator scratch
                + 2 * tm * F_out_p * cd_bytes)   # midpu output tiles

    while _fit_a(TM, TN) > budget:
        if TN >= TM and TN > 128:
            TN //= 2
        elif TM > 128:
            TM //= 2
        else:
            break
    M_p = _round_up(M, TM)
    N_p = _round_up(N, TN)

    # ---- tile size / pipeline depth for call B (pd @ midpu) ----------------
    TP = min(block_p, _round_up(P, 128))
    pd_bufs = 3

    def _fit_b(tp, bufs):
        return (bufs * tp * M_p * pd_bytes       # streamed pd tiles
                + M_p * F_out_p * cd_bytes       # midpu (single-buffered)
                + F_out_p * 4                    # bias
                + 2 * tp * F_out_p * 4)          # f32 output tiles

    while _fit_b(TP, pd_bufs) > budget:
        if pd_bufs > 2:
            pd_bufs -= 1
        elif TP > 128:
            TP //= 2
        else:
            break
    P_p = _round_up(P, TP)

    # Pad only when misaligned; keep the original dtype (cast to bf16 happens
    # per tile inside the kernels -> no extra HBM pass over the adjacencies).
    x_p = _pad2(x, N_p, F_in_p)
    w_p = _pad2(weight, F_in_p, F_out_p)
    pt_p = _pad2(pt, M_p, N_p)
    pd_p = _pad2(pd, P_p, M_p)
    b_p = None
    if bias is not None:
        b_p = _pad2(bias.reshape(1, F_out).astype(jnp.float32), 1, F_out_p)

    cfg = (TM, TN, TP, pd_bufs, M_p, N_p, P_p, F_in_p, F_out_p, cd, vmem_limit)
    try:
        out_p = _gcn_forward(x_p, w_p, pt_p, pd_p, b_p, cfg, use_buffered=True)
    except Exception:
        # Fallback: default double-buffering everywhere (older jax builds).
        out_p = _gcn_forward(x_p, w_p, pt_p, pd_p, b_p, cfg, use_buffered=False)

    return out_p[:P, :F_out]


if __name__ == "__main__":
    # Small shapes consistent with the module: N=64 nodes, M=64 tuple rows,
    # P=64 output rows, in_features=32 -> out_features=32.
    N, M, P = 64, 64, 64
    in_features, out_features = 32, 32

    key = jax.random.PRNGKey(0)
    k_x, k_pt, k_pd, k_w, k_b = jax.random.split(key, 5)

    x = jax.random.normal(k_x, (N, in_features), dtype=jnp.float32)
    pt = jax.random.uniform(k_pt, (M, N), dtype=jnp.float32)
    pd = jax.random.uniform(k_pd, (P, M), dtype=jnp.float32)

    # Deterministic parameter init mirroring reset_parameters():
    stdv = 1.0 / math.sqrt(out_features)
    weight = jax.random.uniform(k_w, (in_features, out_features),
                                dtype=jnp.float32, minval=-stdv, maxval=stdv)
    bias = jax.random.uniform(k_b, (out_features,), dtype=jnp.float32,
                              minval=-stdv, maxval=stdv)

    out = tuple_adj_graph_convolution(x, weight, pt, pd, bias)
    out = jax.block_until_ready(out)
    assert out.shape == (P, out_features)

    # Reference 1: mirrors the kernel's bf16 quantization points exactly
    # (bf16 operands, f32 accumulation) -> tight tolerance.
    hp = jax.lax.Precision.HIGHEST
    up = lambda a: a.astype(jnp.bfloat16).astype(jnp.float32)
    support_r = jnp.dot(up(x), up(weight), precision=hp)
    mid_r = jnp.dot(up(pt), up(support_r), precision=hp)
    ref = jnp.dot(up(pd), up(mid_r), precision=hp) + bias[None, :]
    assert jnp.allclose(out, ref, atol=1e-2, rtol=1e-2), \
        float(jnp.max(jnp.abs(out - ref)))

    # Reference 2: exact f32 module semantics, loose tolerance (bf16 compute).
    ref_f32 = jnp.dot(pd, jnp.dot(pt, jnp.dot(x, weight, precision=hp),
                                  precision=hp), precision=hp) + bias[None, :]
    assert jnp.allclose(out, ref_f32, atol=0.5, rtol=5e-2)

    # No-bias path (bias operand is dropped and the add is skipped).
    out_nb = jax.block_until_ready(
        tuple_adj_graph_convolution(x, weight, pt, pd, None))
    assert jnp.allclose(out_nb, ref - bias[None, :], atol=1e-2, rtol=1e-2)

    print("KERNEL_OK")
</pallas_src>

<mosaic_0001>
module attributes {stable_mosaic.version = 11 : i64} {
  func.func @_midpu_kernel(%arg0: i32, %arg1: i32, %arg2: memref<128x128xf32, #tpu.memory_space<vmem>>, %arg3: memref<128x128xf32, #tpu.memory_space<vmem>>, %arg4: memref<128x128xf32, #tpu.memory_space<vmem>>, %arg5: memref<128x128xbf16, #tpu.memory_space<vmem>>, %arg6: memref<128x128xf32, #tpu.memory_space<vmem>>) attributes {dimension_semantics = [#tpu.dimension_semantics<parallel>, #tpu.dimension_semantics<arbitrary>], iteration_bounds = array<i64: 1, 1>, scalar_prefetch = 0 : i64, scratch_operands = 1 : i64, tpu.core_type = #tpu.core_type<tc>, window_params = [{transform_indices = @transform_0, window_bounds = array<i64: 128, 128>}, {pipeline_mode = #tpu.pipeline_mode<synchronous>, transform_indices = @transform_1, window_bounds = array<i64: 128, 128>}, {transform_indices = @transform_2, window_bounds = array<i64: 128, 128>}, {transform_indices = @transform_3, window_bounds = array<i64: 128, 128>}]} {
    %c0_i32 = arith.constant 0 : i32
    %0 = arith.cmpi eq, %arg1, %c0_i32 : i32
    %1 = arith.extui %0 : i1 to i32
    %c0_i32_0 = arith.constant 0 : i32
    %2 = arith.cmpi ne, %1, %c0_i32_0 : i32
    scf.if %2 {
      %cst_13 = arith.constant 0.000000e+00 : f32
      %18 = vector.broadcast %cst_13 : f32 to vector<128x128xf32>
      %c0_14 = arith.constant 0 : index
      %c0_15 = arith.constant 0 : index
      %19 = vector.load %arg6[%c0_14, %c0_15] : memref<128x128xf32, #tpu.memory_space<vmem>>, vector<128x128xf32>
      tpu.vector_store %arg6[%c0_14, %c0_15], %18 {strides = array<i32>} : memref<128x128xf32, #tpu.memory_space<vmem>>, vector<128x128xf32>,
    } else {
    }
    %c0 = arith.constant 0 : index
    %c0_1 = arith.constant 0 : index
    %3 = vector.load %arg2[%c0, %c0_1] : memref<128x128xf32, #tpu.memory_space<vmem>>, vector<128x128xf32>
    %4 = arith.truncf %3 : vector<128x128xf32> to vector<128x128xbf16>
    %c0_2 = arith.constant 0 : index
    %c0_3 = arith.constant 0 : index
    %5 = vector.load %arg3[%c0_2, %c0_3] : memref<128x128xf32, #tpu.memory_space<vmem>>, vector<128x128xf32>
    %6 = arith.truncf %5 : vector<128x128xf32> to vector<128x128xbf16>
    %cst = arith.constant dense<0.000000e+00> : vector<128x128xf32>
    %7 = tpu.matmul %4, %6, %cst {dimension_numbers = #tpu.dot_dimension_numbers<[1], [0], [0], [1], [0, 0, 1, 1], [], []>} : vector<128x128xbf16>, vector<128x128xbf16>, vector<128x128xf32> -> vector<128x128xf32>
    %c0_4 = arith.constant 0 : index
    %c0_5 = arith.constant 0 : index
    %8 = vector.load %arg6[%c0_4, %c0_5] : memref<128x128xf32, #tpu.memory_space<vmem>>, vector<128x128xf32>
    %c0_6 = arith.constant 0 : index
    %c0_7 = arith.constant 0 : index
    %9 = vector.load %arg4[%c0_6, %c0_7] : memref<128x128xf32, #tpu.memory_space<vmem>>, vector<128x128xf32>
    %10 = arith.truncf %9 : vector<128x128xf32> to vector<128x128xbf16>
    %11 = arith.truncf %7 : vector<128x128xf32> to vector<128x128xbf16>
    %cst_8 = arith.constant dense<0.000000e+00> : vector<128x128xf32>
    %12 = tpu.matmul %10, %11, %cst_8 {dimension_numbers = #tpu.dot_dimension_numbers<[1], [0], [0], [1], [0, 0, 1, 1], [], []>} : vector<128x128xbf16>, vector<128x128xbf16>, vector<128x128xf32> -> vector<128x128xf32>
    %13 = arith.addf %8, %12 : vector<128x128xf32>
    %c0_9 = arith.constant 0 : index
    %c0_10 = arith.constant 0 : index
    %14 = vector.load %arg6[%c0_9, %c0_10] : memref<128x128xf32, #tpu.memory_space<vmem>>, vector<128x128xf32>
    tpu.vector_store %arg6[%c0_9, %c0_10], %13 {strides = array<i32>} : memref<128x128xf32, #tpu.memory_space<vmem>>, vector<128x128xf32>,
    %c0_i32_11 = arith.constant 0 : i32
    %15 = arith.cmpi eq, %arg1, %c0_i32_11 : i32
    %16 = arith.extui %15 : i1 to i32
    %c0_i32_12 = arith.constant 0 : i32
    %17 = arith.cmpi ne, %16, %c0_i32_12 : i32
    scf.if %17 {
      %c0_13 = arith.constant 0 : index
      %c0_14 = arith.constant 0 : index
      %18 = vector.load %arg6[%c0_13, %c0_14] : memref<128x128xf32, #tpu.memory_space<vmem>>, vector<128x128xf32>
      %19 = arith.truncf %18 : vector<128x128xf32> to vector<128x128xbf16>
      %c0_15 = arith.constant 0 : index
      %c0_16 = arith.constant 0 : index
      %20 = vector.load %arg5[%c0_15, %c0_16] : memref<128x128xbf16, #tpu.memory_space<vmem>>, vector<128x128xbf16>
      tpu.vector_store %arg5[%c0_15, %c0_16], %19 {strides = array<i32>} : memref<128x128xbf16, #tpu.memory_space<vmem>>, vector<128x128xbf16>,
    } else {
    }
    return
  }
  func.func @transform_0(%arg0: i32, %arg1: i32) -> (i32, i32) {
    %c0_i32 = arith.constant 0 : i32
    %c0_i32_0 = arith.constant 0 : i32
    return %arg1, %c0_i32 : i32, i32
  }
  func.func @transform_1(%arg0: i32, %arg1: i32) -> (i32, i32) {
    %c0_i32 = arith.constant 0 : i32
    %c0_i32_0 = arith.constant 0 : i32
    %c0_i32_1 = arith.constant 0 : i32
    return %c0_i32, %c0_i32_0 : i32, i32
  }
  func.func @transform_2(%arg0: i32, %arg1: i32) -> (i32, i32) {
    %c0_i32 = arith.constant 0 : i32
    return %arg0, %arg1 : i32, i32
  }
  func.func @transform_3(%arg0: i32, %arg1: i32) -> (i32, i32) {
    %c0_i32 = arith.constant 0 : i32
    %c0_i32_0 = arith.constant 0 : i32
    return %arg0, %c0_i32 : i32, i32
  }
}

module attributes {stable_mosaic.version = 11 : i64} {
  func.func @_midpu_kernel(%arg0: i32, %arg1: i32, %arg2: memref<128x128xf32, #tpu.memory_space<vmem>>, %arg3: memref<128x128xf32, #tpu.memory_space<vmem>>, %arg4: memref<128x128xf32, #tpu.memory_space<vmem>>, %arg5: memref<128x128xbf16, #tpu.memory_space<vmem>>, %arg6: memref<128x128xf32, #tpu.memory_space<vmem>>) attributes {dimension_semantics = [#tpu.dimension_semantics<parallel>, #tpu.dimension_semantics<arbitrary>], iteration_bounds = array<i64: 1, 1>, scalar_prefetch = 0 : i64, scratch_operands = 1 : i64, tpu.core_type = #tpu.core_type<tc>, window_params = [{transform_indices = @transform_0, window_bounds = array<i64: 128, 128>}, {pipeline_mode = #tpu.pipeline_mode<synchronous>, transform_indices = @transform_1, window_bounds = array<i64: 128, 128>}, {transform_indices = @transform_2, window_bounds = array<i64: 128, 128>}, {transform_indices = @transform_3, window_bounds = array<i64: 128, 128>}]} {
    %c0_i32 = arith.constant 0 : i32
    %0 = arith.cmpi eq, %arg1, %c0_i32 : i32
    %1 = arith.extui %0 : i1 to i32
    %c0_i32_0 = arith.constant 0 : i32
    %2 = arith.cmpi ne, %1, %c0_i32_0 : i32
    scf.if %2 {
      %cst_13 = arith.constant 0.000000e+00 : f32
      %18 = vector.broadcast %cst_13 : f32 to vector<128x128xf32>
      %c0_14 = arith.constant 0 : index
      %c0_15 = arith.constant 0 : index
      %19 = vector.load %arg6[%c0_14, %c0_15] : memref<128x128xf32, #tpu.memory_space<vmem>>, vector<128x128xf32>
      tpu.vector_store %arg6[%c0_14, %c0_15], %18 {strides = array<i32>} : memref<128x128xf32, #tpu.memory_space<vmem>>, vector<128x128xf32>,
    } else {
    }
    %c0 = arith.constant 0 : index
    %c0_1 = arith.constant 0 : index
    %3 = vector.load %arg2[%c0, %c0_1] : memref<128x128xf32, #tpu.memory_space<vmem>>, vector<128x128xf32>
    %4 = arith.truncf %3 : vector<128x128xf32> to vector<128x128xbf16>
    %c0_2 = arith.constant 0 : index
    %c0_3 = arith.constant 0 : index
    %5 = vector.load %arg3[%c0_2, %c0_3] : memref<128x128xf32, #tpu.memory_space<vmem>>, vector<128x128xf32>
    %6 = arith.truncf %5 : vector<128x128xf32> to vector<128x128xbf16>
    %cst = arith.constant dense<0.000000e+00> : vector<128x128xf32>
    %7 = tpu.matmul %4, %6, %cst {dimension_numbers = #tpu.dot_dimension_numbers<[1], [0], [0], [1], [0, 0, 1, 1], [], []>} : vector<128x128xbf16>, vector<128x128xbf16>, vector<128x128xf32> -> vector<128x128xf32>
    %c0_4 = arith.constant 0 : index
    %c0_5 = arith.constant 0 : index
    %8 = vector.load %arg6[%c0_4, %c0_5] : memref<128x128xf32, #tpu.memory_space<vmem>>, vector<128x128xf32>
    %c0_6 = arith.constant 0 : index
    %c0_7 = arith.constant 0 : index
    %9 = vector.load %arg4[%c0_6, %c0_7] : memref<128x128xf32, #tpu.memory_space<vmem>>, vector<128x128xf32>
    %10 = arith.truncf %9 : vector<128x128xf32> to vector<128x128xbf16>
    %11 = arith.truncf %7 : vector<128x128xf32> to vector<128x128xbf16>
    %cst_8 = arith.constant dense<0.000000e+00> : vector<128x128xf32>
    %12 = tpu.matmul %10, %11, %cst_8 {dimension_numbers = #tpu.dot_dimension_numbers<[1], [0], [0], [1], [0, 0, 1, 1], [], []>} : vector<128x128xbf16>, vector<128x128xbf16>, vector<128x128xf32> -> vector<128x128xf32>
    %13 = arith.addf %8, %12 : vector<128x128xf32>
    %c0_9 = arith.constant 0 : index
    %c0_10 = arith.constant 0 : index
    %14 = vector.load %arg6[%c0_9, %c0_10] : memref<128x128xf32, #tpu.memory_space<vmem>>, vector<128x128xf32>
    tpu.vector_store %arg6[%c0_9, %c0_10], %13 {strides = array<i32>} : memref<128x128xf32, #tpu.memory_space<vmem>>, vector<128x128xf32>,
    %c0_i32_11 = arith.constant 0 : i32
    %15 = arith.cmpi eq, %arg1, %c0_i32_11 : i32
    %16 = arith.extui %15 : i1 to i32
    %c0_i32_12 = arith.constant 0 : i32
    %17 = arith.cmpi ne, %16, %c0_i32_12 : i32
    scf.if %17 {
      %c0_13 = arith.constant 0 : index
      %c0_14 = arith.constant 0 : index
      %18 = vector.load %arg6[%c0_13, %c0_14] : memref<128x128xf32, #tpu.memory_space<vmem>>, vector<128x128xf32>
      %19 = arith.truncf %18 : vector<128x128xf32> to vector<128x128xbf16>
      %c0_15 = arith.constant 0 : index
      %c0_16 = arith.constant 0 : index
      %20 = vector.load %arg5[%c0_15, %c0_16] : memref<128x128xbf16, #tpu.memory_space<vmem>>, vector<128x128xbf16>
      tpu.vector_store %arg5[%c0_15, %c0_16], %19 {strides = array<i32>} : memref<128x128xbf16, #tpu.memory_space<vmem>>, vector<128x128xbf16>,
    } else {
    }
    return
  }
  func.func @transform_0(%arg0: i32, %arg1: i32) -> (i32, i32) {
    %c0_i32 = arith.constant 0 : i32
    %c0_i32_0 = arith.constant 0 : i32
    return %arg1, %c0_i32 : i32, i32
  }
  func.func @transform_1(%arg0: i32, %arg1: i32) -> (i32, i32) {
    %c0_i32 = arith.constant 0 : i32
    %c0_i32_0 = arith.constant 0 : i32
    %c0_i32_1 = arith.constant 0 : i32
    return %c0_i32, %c0_i32_0 : i32, i32
  }
  func.func @transform_2(%arg0: i32, %arg1: i32) -> (i32, i32) {
    %c0_i32 = arith.constant 0 : i32
    return %arg0, %arg1 : i32, i32
  }
  func.func @transform_3(%arg0: i32, %arg1: i32) -> (i32, i32) {
    %c0_i32 = arith.constant 0 : i32
    %c0_i32_0 = arith.constant 0 : i32
    return %arg0, %c0_i32 : i32, i32
  }
}

</mosaic_0001>

<llo_original>
// kernel: tpu_custom_call.1
$region0: #{tpu_custom_call.1}
  #allocation0 [shape = 'u32[]', space=smem, size = 0x4, offset = 0x4, fixed_abs, tag = 'smem constant byte address 0x4 - core index']
  #allocation1 [shape = 'u32[144,128]{1,0:T(1,128)}', space=vmem, size = 0x12000, scoped, tag = 'internal scratch']
  #allocation2 [shape = 'f32[128,128]{1,0:T(8,128)}', space=vmem, size = 0x10000, scoped, tag = 'scratch operand']
  %s0 = inlined_call_operand.hbm [shape: f32[128,128], index: 0, kind: input, shape index: {}]
  %s1 = inlined_call_operand.hbm [shape: f32[128,128], index: 1, kind: input, shape index: {}]
  %s2 = inlined_call_operand.hbm [shape: f32[128,128], index: 2, kind: input, shape index: {}]
  %s3 = inlined_call_operand.hbm [shape: bf16[128,128], index: 3, kind: output, shape index: {}]
  %s4 = sld [smem:[#allocation0]]
  $region42: #{tpu_custom_call.1} parent=0
    _
  %s6 = ssub.s32 1, %s4
  %s7 = scalar_select 0, %s6, %s4
  $region1: #{tpu_custom_call.1} parent=0
    #allocation3 [shape = 'u8[65536]{0}', space=vmem, size = 0x10000, scoped, tag = 'input window, operand 0, single buffered']
    #allocation4 [shape = 's32[1]{0}', space=sflag, size = 0x4, scoped, tag = 'scoped memory for tpu_custom_call.1']
    #allocation5 [shape = 's32[1]{0}', space=sflag, size = 0x4, scoped, tag = 'scoped memory for tpu_custom_call.1']
    #allocation6 [shape = 'u8[65536]{0}', space=vmem, size = 0x10000, scoped, tag = 'input window, operand 1, single buffered']
    #allocation7 [shape = 's32[1]{0}', space=sflag, size = 0x4, scoped, tag = 'scoped memory for tpu_custom_call.1']
    #allocation8 [shape = 'u8[65536]{0}', space=vmem, size = 0x10000, scoped, tag = 'input window, operand 2, single buffered']
    #allocation9 [shape = 'u8[32768]{0}', space=vmem, size = 0x8000, scoped, tag = 'output window, operand 0, single buffered']
    %8 = vsyncpa [#allocation4], 0
    %9 = vsyncpa [#allocation7], 0
    %10 = vsyncpa [#allocation5], 0
    // Predicated region
    $region2: #{tpu_custom_call.1} parent=1 // pred_check
      _
    $region3: #{tpu_custom_call.1} parent=1 // pred_check_branch
      %12 = sbr.rel (0) target = $region5
    $region4: #{tpu_custom_call.1} parent=1 // pred_region
      %s14 = ssub.s32 2048, 2048
      %15 = vsyncadd [#allocation4], %s14
      %s16 = sshll.u32 [#allocation3], 4
      %s17 = int_to_ptr.vmem [resolvable:$true] %s16
      %22 = dma.hbm_to_vmem [thread:$0]  %s0, 2048, %s17, [#allocation4], 128, 128, 8
    $region5: #{tpu_custom_call.1} parent=1 // pred_fallthru
      _
    // Predicated region
    $region6: #{tpu_custom_call.1} parent=1 // pred_check
      _
    $region7: #{tpu_custom_call.1} parent=1 // pred_check_branch
      %24 = sbr.rel (0) target = $region9
    $region8: #{tpu_custom_call.1} parent=1 // pred_region
      %s26 = ssub.s32 2048, 2048
      %27 = vsyncadd [#allocation7], %s26
      %s28 = sshll.u32 [#allocation6], 4
      %s29 = int_to_ptr.vmem [resolvable:$true] %s28
      %34 = dma.hbm_to_vmem [thread:$0]  %s1, 2048, %s29, [#allocation7], 128, 128, 8
    $region9: #{tpu_custom_call.1} parent=1 // pred_fallthru
      _
    // Predicated region
    $region10: #{tpu_custom_call.1} parent=1 // pred_check
      _
    $region11: #{tpu_custom_call.1} parent=1 // pred_check_branch
      %36 = sbr.rel (0) target = $region13
    $region12: #{tpu_custom_call.1} parent=1 // pred_region
      %s38 = ssub.s32 2048, 2048
      %39 = vsyncadd [#allocation7], %s38
      %s40 = sshll.u32 [#allocation8], 4
      %s41 = int_to_ptr.vmem [resolvable:$true] %s40
      %46 = dma.hbm_to_vmem [thread:$0]  %s2, 2048, %s41, [#allocation7], 128, 128, 8
    $region13: #{tpu_custom_call.1} parent=1 // pred_fallthru
      _
    // Predicated region
    $region14: #{tpu_custom_call.1} parent=1 // pred_check
      _
    $region15: #{tpu_custom_call.1} parent=1 // pred_check_branch
      %48 = sbr.rel (0) target = $region17
    $region16: #{tpu_custom_call.1} parent=1 // pred_region
      %49 = dma.done [#allocation4], 2048
    $region17: #{tpu_custom_call.1} parent=1 // pred_fallthru
      _
    // Predicated region
    $region18: #{tpu_custom_call.1} parent=1 // pred_check
      _
    $region19: #{tpu_custom_call.1} parent=1 // pred_check_branch
      %51 = sbr.rel (0) target = $region21
    $region20: #{tpu_custom_call.1} parent=1 // pred_region
      %52 = dma.done [#allocation7], 2048
    $region21: #{tpu_custom_call.1} parent=1 // pred_fallthru
      _
    // Predicated region
    $region22: #{tpu_custom_call.1} parent=1 // pred_check
      _
    $region23: #{tpu_custom_call.1} parent=1 // pred_check_branch
      %54 = sbr.rel (0) target = $region25
    $region24: #{tpu_custom_call.1} parent=1 // pred_region
      %55 = dma.done [#allocation7], 2048
    $region25: #{tpu_custom_call.1} parent=1 // pred_fallthru
      _
    %p57 = scmp.eq.s32.totalorder 0, 0
    // Predicated region
    $region26: #{tpu_custom_call.1} parent=1 // pred_check
      %p58 = pneg %p57
    $region27: #{tpu_custom_call.1} parent=1 // pred_check_branch
      %60 = sbr.rel (%p58) target = $region29
    $region28: #{tpu_custom_call.1} parent=1 // pred_region
      %61 = vst [vmem:[#allocation2] sm:$0xff] 0.0
      %62 = vst [vmem:[#allocation2 + $0x8] sm:$0xff] 0.0
      %63 = vst [vmem:[#allocation2 + $0x10] sm:$0xff] 0.0
      %64 = vst [vmem:[#allocation2 + $0x18] sm:$0xff] 0.0
      %65 = vst [vmem:[#allocation2 + $0x20] sm:$0xff] 0.0
      %66 = vst [vmem:[#allocation2 + $0x28] sm:$0xff] 0.0
      %67 = vst [vmem:[#allocation2 + $0x30] sm:$0xff] 0.0
      %68 = vst [vmem:[#allocation2 + $0x38] sm:$0xff] 0.0
      %69 = vst [vmem:[#allocation2 + $0x40] sm:$0xff] 0.0
      %70 = vst [vmem:[#allocation2 + $0x48] sm:$0xff] 0.0
      %71 = vst [vmem:[#allocation2 + $0x50] sm:$0xff] 0.0
      %72 = vst [vmem:[#allocation2 + $0x58] sm:$0xff] 0.0
      %73 = vst [vmem:[#allocation2 + $0x60] sm:$0xff] 0.0
      %74 = vst [vmem:[#allocation2 + $0x68] sm:$0xff] 0.0
      %75 = vst [vmem:[#allocation2 + $0x70] sm:$0xff] 0.0
      %76 = vst [vmem:[#allocation2 + $0x78] sm:$0xff] 0.0
    $region29: #{tpu_custom_call.1} parent=1 // pred_fallthru
      _
    %v77 = vld [vmem:[#allocation3] sm:$0xff]
    %v78 = vld [vmem:[#allocation3 + $0x8] sm:$0xff]
    %v79 = vld [vmem:[#allocation3 + $0x10] sm:$0xff]
    %v80 = vld [vmem:[#allocation3 + $0x18] sm:$0xff]
    %v81 = vld [vmem:[#allocation3 + $0x20] sm:$0xff]
    %v82 = vld [vmem:[#allocation3 + $0x28] sm:$0xff]
    %v83 = vld [vmem:[#allocation3 + $0x30] sm:$0xff]
    %v84 = vld [vmem:[#allocation3 + $0x38] sm:$0xff]
    %v85 = vld [vmem:[#allocation3 + $0x40] sm:$0xff]
    %v86 = vld [vmem:[#allocation3 + $0x48] sm:$0xff]
    %v87 = vld [vmem:[#allocation3 + $0x50] sm:$0xff]
    %v88 = vld [vmem:[#allocation3 + $0x58] sm:$0xff]
    %v89 = vld [vmem:[#allocation3 + $0x60] sm:$0xff]
    %v90 = vld [vmem:[#allocation3 + $0x68] sm:$0xff]
    %v91 = vld [vmem:[#allocation3 + $0x70] sm:$0xff]
    %v92 = vld [vmem:[#allocation3 + $0x78] sm:$0xff]
    %v93 = vpack.c.bf16 %v78, %v77
    %v94 = vpack.c.bf16 %v80, %v79
    %v95 = vpack.c.bf16 %v82, %v81
    %v96 = vpack.c.bf16 %v84, %v83
    %v97 = vpack.c.bf16 %v86, %v85
    %v98 = vpack.c.bf16 %v88, %v87
    %v99 = vpack.c.bf16 %v90, %v89
    %v100 = vpack.c.bf16 %v92, %v91
    %v101 = vld [vmem:[#allocation6] sm:$0xff]
    %v102 = vld [vmem:[#allocation6 + $0x8] sm:$0xff]
    %v103 = vld [vmem:[#allocation6 + $0x10] sm:$0xff]
    %v104 = vld [vmem:[#allocation6 + $0x18] sm:$0xff]
    %v105 = vld [vmem:[#allocation6 + $0x20] sm:$0xff]
    %v106 = vld [vmem:[#allocation6 + $0x28] sm:$0xff]
    %v107 = vld [vmem:[#allocation6 + $0x30] sm:$0xff]
    %v108 = vld [vmem:[#allocation6 + $0x38] sm:$0xff]
    %v109 = vld [vmem:[#allocation6 + $0x40] sm:$0xff]
    %v110 = vld [vmem:[#allocation6 + $0x48] sm:$0xff]
    %v111 = vld [vmem:[#allocation6 + $0x50] sm:$0xff]
    %v112 = vld [vmem:[#allocation6 + $0x58] sm:$0xff]
    %v113 = vld [vmem:[#allocation6 + $0x60] sm:$0xff]
    %v114 = vld [vmem:[#allocation6 + $0x68] sm:$0xff]
    %v115 = vld [vmem:[#allocation6 + $0x70] sm:$0xff]
    %v116 = vld [vmem:[#allocation6 + $0x78] sm:$0xff]
    %v117 = vpack.c.bf16 %v102, %v101
    %v118 = vpack.c.bf16 %v104, %v103
    %v119 = vpack.c.bf16 %v106, %v105
    %v120 = vpack.c.bf16 %v108, %v107
    %v121 = vpack.c.bf16 %v110, %v109
    %v122 = vpack.c.bf16 %v112, %v111
    %v123 = vpack.c.bf16 %v114, %v113
    %v124 = vpack.c.bf16 %v116, %v115
    %125 = vmatprep.subr.bf16.mxu0 0
    %126 = vmatpush1.bf16.msra.mxu0 %v117
    %127 = vmatprep.subr.bf16.mxu0 0
    %128 = vmatpush1.bf16.msra.mxu0 %v118
    %129 = vmatprep.subr.bf16.mxu0 0
    %130 = vmatpush1.bf16.msra.mxu0 %v119
    %131 = vmatprep.subr.bf16.mxu0 0
    %132 = vmatpush1.bf16.msra.mxu0 %v120
    %133 = vmatprep.subr.bf16.mxu0 0
    %134 = vmatpush1.bf16.msra.mxu0 %v121
    %135 = vmatprep.subr.bf16.mxu0 0
    %136 = vmatpush1.bf16.msra.mxu0 %v122
    %137 = vmatprep.subr.bf16.mxu0 0
    %138 = vmatpush1.bf16.msra.mxu0 %v123
    %139 = vmatprep.subr.bf16.mxu0 0
    %140 = vmatpush1.bf16.msra.mxu0 %v124
    %141 = vmatprep.subr.bf16.mxu0 0
    %142 = vmatpush1.bf16.msra.mxu0 0
    %143 = vmatprep.subr.bf16.mxu0 0
    %144 = vmatpush1.bf16.msra.mxu0 0
    %145 = vmatprep.subr.bf16.mxu0 0
    %146 = vmatpush1.bf16.msra.mxu0 0
    %147 = vmatprep.subr.bf16.mxu0 0
    %148 = vmatpush1.bf16.msra.mxu0 0
    %149 = vmatprep.subr.bf16.mxu0 0
    %150 = vmatpush1.bf16.msra.mxu0 0
    %151 = vmatprep.subr.bf16.mxu0 0
    %152 = vmatpush1.bf16.msra.mxu0 0
    %153 = vmatprep.subr.bf16.mxu0 0
    %154 = vmatpush1.bf16.msra.mxu0 0
    %155 = vmatprep.subr.bf16.mxu0 0
    %156 = vmatpush1.bf16.msra.mxu0 0
    %157 = vmatprep.mubr.bf16.mxu0 0
    %158 = vmatmul.mubr.bf16.gmra.mrb[0].mxu0 %v93
    %v159 = vpop.f32.mrb[0].mxu0
    %v160 = vadd.f32 0.0, %v159
    %v161 = vpop.f32.mrb[0].mxu0
    %v162 = vpop.f32.mrb[0].mxu0
    %v163 = vadd.f32 0.0, %v162
    %v164 = vpop.f32.mrb[0].mxu0
    %165 = vmatprep.mubr.bf16.mxu0 0
    %166 = vmatmul.mubr.bf16.gmra.mrb[0].mxu0 %v94
    %v167 = vpop.f32.mrb[0].mxu0
    %v168 = vadd.f32 0.0, %v167
    %v169 = vpop.f32.mrb[0].mxu0
    %v170 = vpop.f32.mrb[0].mxu0
    %v171 = vadd.f32 0.0, %v170
    %v172 = vpop.f32.mrb[0].mxu0
    %173 = vmatprep.mubr.bf16.mxu0 0
    %174 = vmatmul.mubr.bf16.gmra.mrb[0].mxu0 %v95
    %v175 = vpop.f32.mrb[0].mxu0
    %v176 = vadd.f32 0.0, %v175
    %v177 = vpop.f32.mrb[0].mxu0
    %v178 = vpop.f32.mrb[0].mxu0
    %v179 = vadd.f32 0.0, %v178
    %v180 = vpop.f32.mrb[0].mxu0
    %181 = vmatprep.mubr.bf16.mxu0 0
    %182 = vmatmul.mubr.bf16.gmra.mrb[0].mxu0 %v96
    %v183 = vpop.f32.mrb[0].mxu0
    %v184 = vadd.f32 0.0, %v183
    %v185 = vpop.f32.mrb[0].mxu0
    %v186 = vpop.f32.mrb[0].mxu0
    %v187 = vadd.f32 0.0, %v186
    %v188 = vpop.f32.mrb[0].mxu0
    %189 = vmatprep.mubr.bf16.mxu0 0
    %190 = vmatmul.mubr.bf16.gmra.mrb[0].mxu0 %v97
    %v191 = vpop.f32.mrb[0].mxu0
    %v192 = vadd.f32 0.0, %v191
    %v193 = vpop.f32.mrb[0].mxu0
    %v194 = vpop.f32.mrb[0].mxu0
    %v195 = vadd.f32 0.0, %v194
    %v196 = vpop.f32.mrb[0].mxu0
    %197 = vmatprep.mubr.bf16.mxu0 0
    %198 = vmatmul.mubr.bf16.gmra.mrb[0].mxu0 %v98
    %v199 = vpop.f32.mrb[0].mxu0
    %v200 = vadd.f32 0.0, %v199
    %v201 = vpop.f32.mrb[0].mxu0
    %v202 = vpop.f32.mrb[0].mxu0
    %v203 = vadd.f32 0.0, %v202
    %v204 = vpop.f32.mrb[0].mxu0
    %205 = vmatprep.mubr.bf16.mxu0 0
    %206 = vmatmul.mubr.bf16.gmra.mrb[0].mxu0 %v99
    %v207 = vpop.f32.mrb[0].mxu0
    %v208 = vadd.f32 0.0, %v207
    %v209 = vpop.f32.mrb[0].mxu0
    %v210 = vpop.f32.mrb[0].mxu0
    %v211 = vadd.f32 0.0, %v210
    %v212 = vpop.f32.mrb[0].mxu0
    %213 = vmatprep.mubr.bf16.mxu0 0
    %214 = vmatmul.mubr.bf16.gmra.mrb[0].mxu0 %v100
    %v215 = vpop.f32.mrb[0].mxu0
    %v216 = vadd.f32 0.0, %v215
    %v217 = vpop.f32.mrb[0].mxu0
    %v218 = vpop.f32.mrb[0].mxu0
    %v219 = vadd.f32 0.0, %v218
    %v220 = vpop.f32.mrb[0].mxu0
    %221 = vdwg.mxu0
    %v222 = vld [vmem:[#allocation2] sm:$0xff]
    %v223 = vld [vmem:[#allocation2 + $0x8] sm:$0xff]
    %v224 = vld [vmem:[#allocation2 + $0x10] sm:$0xff]
    %v225 = vld [vmem:[#allocation2 + $0x18] sm:$0xff]
    %v226 = vld [vmem:[#allocation2 + $0x20] sm:$0xff]
    %v227 = vld [vmem:[#allocation2 + $0x28] sm:$0xff]
    %v228 = vld [vmem:[#allocation2 + $0x30] sm:$0xff]
    %v229 = vld [vmem:[#allocation2 + $0x38] sm:$0xff]
    %v230 = vld [vmem:[#allocation2 + $0x40] sm:$0xff]
    %v231 = vld [vmem:[#allocation2 + $0x48] sm:$0xff]
    %v232 = vld [vmem:[#allocation2 + $0x50] sm:$0xff]
    %v233 = vld [vmem:[#allocation2 + $0x58] sm:$0xff]
    %v234 = vld [vmem:[#allocation2 + $0x60] sm:$0xff]
    %v235 = vld [vmem:[#allocation2 + $0x68] sm:$0xff]
    %v236 = vld [vmem:[#allocation2 + $0x70] sm:$0xff]
    %v237 = vld [vmem:[#allocation2 + $0x78] sm:$0xff]
    %v238 = vld [vmem:[#allocation8] sm:$0xff]
    %v239 = vld [vmem:[#allocation8 + $0x8] sm:$0xff]
    %v240 = vld [vmem:[#allocation8 + $0x10] sm:$0xff]
    %v241 = vld [vmem:[#allocation8 + $0x18] sm:$0xff]
    %v242 = vld [vmem:[#allocation8 + $0x20] sm:$0xff]
    %v243 = vld [vmem:[#allocation8 + $0x28] sm:$0xff]
    %v244 = vld [vmem:[#allocation8 + $0x30] sm:$0xff]
    %v245 = vld [vmem:[#allocation8 + $0x38] sm:$0xff]
    %v246 = vld [vmem:[#allocation8 + $0x40] sm:$0xff]
    %v247 = vld [vmem:[#allocation8 + $0x48] sm:$0xff]
    %v248 = vld [vmem:[#allocation8 + $0x50] sm:$0xff]
    %v249 = vld [vmem:[#allocation8 + $0x58] sm:$0xff]
    %v250 = vld [vmem:[#allocation8 + $0x60] sm:$0xff]
    %v251 = vld [vmem:[#allocation8 + $0x68] sm:$0xff]
    %v252 = vld [vmem:[#allocation8 + $0x70] sm:$0xff]
    %v253 = vld [vmem:[#allocation8 + $0x78] sm:$0xff]
    %v254 = vpack.c.bf16 %v239, %v238
    %v255 = vpack.c.bf16 %v241, %v240
    %v256 = vpack.c.bf16 %v243, %v242
    %v257 = vpack.c.bf16 %v245, %v244
    %v258 = vpack.c.bf16 %v247, %v246
    %v259 = vpack.c.bf16 %v249, %v248
    %v260 = vpack.c.bf16 %v251, %v250
    %v261 = vpack.c.bf16 %v253, %v252
    %v262 = vpack.c.bf16 %v163, %v160
    %v263 = vpack.c.bf16 %v171, %v168
    %v264 = vpack.c.bf16 %v179, %v176
    %v265 = vpack.c.bf16 %v187, %v184
    %v266 = vpack.c.bf16 %v195, %v192
    %v267 = vpack.c.bf16 %v203, %v200
    %v268 = vpack.c.bf16 %v211, %v208
    %v269 = vpack.c.bf16 %v219, %v216
    %270 = vmatprep.subr.bf16.mxu0 0
    %271 = vmatpush1.bf16.msra.mxu0 %v262
    %272 = vmatprep.subr.bf16.mxu0 0
    %273 = vmatpush1.bf16.msra.mxu0 %v263
    %274 = vmatprep.subr.bf16.mxu0 0
    %275 = vmatpush1.bf16.msra.mxu0 %v264
    %276 = vmatprep.subr.bf16.mxu0 0
    %277 = vmatpush1.bf16.msra.mxu0 %v265
    %278 = vmatprep.subr.bf16.mxu0 0
    %279 = vmatpush1.bf16.msra.mxu0 %v266
    %280 = vmatprep.subr.bf16.mxu0 0
    %281 = vmatpush1.bf16.msra.mxu0 %v267
    %282 = vmatprep.subr.bf16.mxu0 0
    %283 = vmatpush1.bf16.msra.mxu0 %v268
    %284 = vmatprep.subr.bf16.mxu0 0
    %285 = vmatpush1.bf16.msra.mxu0 %v269
    %286 = vmatprep.subr.bf16.mxu0 0
    %287 = vmatpush1.bf16.msra.mxu0 0
    %288 = vmatprep.subr.bf16.mxu0 0
    %289 = vmatpush1.bf16.msra.mxu0 0
    %290 = vmatprep.subr.bf16.mxu0 0
    %291 = vmatpush1.bf16.msra.mxu0 0
    %292 = vmatprep.subr.bf16.mxu0 0
    %293 = vmatpush1.bf16.msra.mxu0 0
    %294 = vmatprep.subr.bf16.mxu0 0
    %295 = vmatpush1.bf16.msra.mxu0 0
    %296 = vmatprep.subr.bf16.mxu0 0
    %297 = vmatpush1.bf16.msra.mxu0 0
    %298 = vmatprep.subr.bf16.mxu0 0
    %299 = vmatpush1.bf16.msra.mxu0 0
    %300 = vmatprep.subr.bf16.mxu0 0
    %301 = vmatpush1.bf16.msra.mxu0 0
    %302 = vmatprep.mubr.bf16.mxu0 0
    %303 = vmatmul.mubr.bf16.gmra.mrb[0].mxu0 %v254
    %v304 = vpop.f32.mrb[0].mxu0
    %v305 = vadd.f32 0.0, %v304
    %v306 = vpop.f32.mrb[0].mxu0
    %v307 = vpop.f32.mrb[0].mxu0
    %v308 = vadd.f32 0.0, %v307
    %v309 = vpop.f32.mrb[0].mxu0
    %310 = vmatprep.mubr.bf16.mxu0 0
    %311 = vmatmul.mubr.bf16.gmra.mrb[0].mxu0 %v255
    %v312 = vpop.f32.mrb[0].mxu0
    %v313 = vadd.f32 0.0, %v312
    %v314 = vpop.f32.mrb[0].mxu0
    %v315 = vpop.f32.mrb[0].mxu0
    %v316 = vadd.f32 0.0, %v315
    %v317 = vpop.f32.mrb[0].mxu0
    %318 = vmatprep.mubr.bf16.mxu0 0
    %319 = vmatmul.mubr.bf16.gmra.mrb[0].mxu0 %v256
    %v320 = vpop.f32.mrb[0].mxu0
    %v321 = vadd.f32 0.0, %v320
    %v322 = vpop.f32.mrb[0].mxu0
    %v323 = vpop.f32.mrb[0].mxu0
    %v324 = vadd.f32 0.0, %v323
    %v325 = vpop.f32.mrb[0].mxu0
    %326 = vmatprep.mubr.bf16.mxu0 0
    %327 = vmatmul.mubr.bf16.gmra.mrb[0].mxu0 %v257
    %v328 = vpop.f32.mrb[0].mxu0
    %v329 = vadd.f32 0.0, %v328
    %v330 = vpop.f32.mrb[0].mxu0
    %v331 = vpop.f32.mrb[0].mxu0
    %v332 = vadd.f32 0.0, %v331
    %v333 = vpop.f32.mrb[0].mxu0
    %334 = vmatprep.mubr.bf16.mxu0 0
    %335 = vmatmul.mubr.bf16.gmra.mrb[0].mxu0 %v258
    %v336 = vpop.f32.mrb[0].mxu0
    %v337 = vadd.f32 0.0, %v336
    %v338 = vpop.f32.mrb[0].mxu0
    %v339 = vpop.f32.mrb[0].mxu0
    %v340 = vadd.f32 0.0, %v339
    %v341 = vpop.f32.mrb[0].mxu0
    %342 = vmatprep.mubr.bf16.mxu0 0
    %343 = vmatmul.mubr.bf16.gmra.mrb[0].mxu0 %v259
    %v344 = vpop.f32.mrb[0].mxu0
    %v345 = vadd.f32 0.0, %v344
    %v346 = vpop.f32.mrb[0].mxu0
    %v347 = vpop.f32.mrb[0].mxu0
    %v348 = vadd.f32 0.0, %v347
    %v349 = vpop.f32.mrb[0].mxu0
    %350 = vmatprep.mubr.bf16.mxu0 0
    %351 = vmatmul.mubr.bf16.gmra.mrb[0].mxu0 %v260
    %v352 = vpop.f32.mrb[0].mxu0
    %v353 = vadd.f32 0.0, %v352
    %v354 = vpop.f32.mrb[0].mxu0
    %v355 = vpop.f32.mrb[0].mxu0
    %v356 = vadd.f32 0.0, %v355
    %v357 = vpop.f32.mrb[0].mxu0
    %358 = vmatprep.mubr.bf16.mxu0 0
    %359 = vmatmul.mubr.bf16.gmra.mrb[0].mxu0 %v261
    %v360 = vpop.f32.mrb[0].mxu0
    %v361 = vadd.f32 0.0, %v360
    %v362 = vpop.f32.mrb[0].mxu0
    %v363 = vpop.f32.mrb[0].mxu0
    %v364 = vadd.f32 0.0, %v363
    %v365 = vpop.f32.mrb[0].mxu0
    %366 = vdwg.mxu0
    %v367 = vadd.f32 %v222, %v305
    %v368 = vadd.f32 %v223, %v308
    %v369 = vadd.f32 %v224, %v313
    %v370 = vadd.f32 %v225, %v316
    %v371 = vadd.f32 %v226, %v321
    %v372 = vadd.f32 %v227, %v324
    %v373 = vadd.f32 %v228, %v329
    %v374 = vadd.f32 %v229, %v332
    %v375 = vadd.f32 %v230, %v337
    %v376 = vadd.f32 %v231, %v340
    %v377 = vadd.f32 %v232, %v345
    %v378 = vadd.f32 %v233, %v348
    %v379 = vadd.f32 %v234, %v353
    %v380 = vadd.f32 %v235, %v356
    %v381 = vadd.f32 %v236, %v361
    %v382 = vadd.f32 %v237, %v364
    %383 = vst [vmem:[#allocation2] sm:$0xff] %v367
    %384 = vst [vmem:[#allocation2 + $0x8] sm:$0xff] %v368
    %385 = vst [vmem:[#allocation2 + $0x10] sm:$0xff] %v369
    %386 = vst [vmem:[#allocation2 + $0x18] sm:$0xff] %v370
    %387 = vst [vmem:[#allocation2 + $0x20] sm:$0xff] %v371
    %388 = vst [vmem:[#allocation2 + $0x28] sm:$0xff] %v372
    %389 = vst [vmem:[#allocation2 + $0x30] sm:$0xff] %v373
    %390 = vst [vmem:[#allocation2 + $0x38] sm:$0xff] %v374
    %391 = vst [vmem:[#allocation2 + $0x40] sm:$0xff] %v375
    %392 = vst [vmem:[#allocation2 + $0x48] sm:$0xff] %v376
    %393 = vst [vmem:[#allocation2 + $0x50] sm:$0xff] %v377
    %394 = vst [vmem:[#allocation2 + $0x58] sm:$0xff] %v378
    %395 = vst [vmem:[#allocation2 + $0x60] sm:$0xff] %v379
    %396 = vst [vmem:[#allocation2 + $0x68] sm:$0xff] %v380
    %397 = vst [vmem:[#allocation2 + $0x70] sm:$0xff] %v381
    %398 = vst [vmem:[#allocation2 + $0x78] sm:$0xff] %v382
    // Predicated region
    $region30: #{tpu_custom_call.1} parent=1 // pred_check
      %p399 = pneg %p57
    $region31: #{tpu_custom_call.1} parent=1 // pred_check_branch
      %401 = sbr.rel (%p399) target = $region33
    $region32: #{tpu_custom_call.1} parent=1 // pred_region
      %v402 = vld [vmem:[#allocation2] sm:$0xff]
      %v403 = vld [vmem:[#allocation2 + $0x8] sm:$0xff]
      %v404 = vld [vmem:[#allocation2 + $0x10] sm:$0xff]
      %v405 = vld [vmem:[#allocation2 + $0x18] sm:$0xff]
      %v406 = vld [vmem:[#allocation2 + $0x20] sm:$0xff]
      %v407 = vld [vmem:[#allocation2 + $0x28] sm:$0xff]
      %v408 = vld [vmem:[#allocation2 + $0x30] sm:$0xff]
      %v409 = vld [vmem:[#allocation2 + $0x38] sm:$0xff]
      %v410 = vld [vmem:[#allocation2 + $0x40] sm:$0xff]
      %v411 = vld [vmem:[#allocation2 + $0x48] sm:$0xff]
      %v412 = vld [vmem:[#allocation2 + $0x50] sm:$0xff]
      %v413 = vld [vmem:[#allocation2 + $0x58] sm:$0xff]
      %v414 = vld [vmem:[#allocation2 + $0x60] sm:$0xff]
      %v415 = vld [vmem:[#allocation2 + $0x68] sm:$0xff]
      %v416 = vld [vmem:[#allocation2 + $0x70] sm:$0xff]
      %v417 = vld [vmem:[#allocation2 + $0x78] sm:$0xff]
      %v418 = vpack.c.bf16 %v403, %v402
      %v419 = vpack.c.bf16 %v405, %v404
      %v420 = vpack.c.bf16 %v407, %v406
      %v421 = vpack.c.bf16 %v409, %v408
      %v422 = vpack.c.bf16 %v411, %v410
      %v423 = vpack.c.bf16 %v413, %v412
      %v424 = vpack.c.bf16 %v415, %v414
      %v425 = vpack.c.bf16 %v417, %v416
      %v434 = vunpack.c.l.b16 %v418
      %v435 = vunpack.c.h.b16 %v418
      %v436 = vunpack.c.l.b16 %v419
      %v437 = vunpack.c.h.b16 %v419
      %v438 = vunpack.c.l.b16 %v420
      %v439 = vunpack.c.h.b16 %v420
      %v440 = vunpack.c.l.b16 %v421
      %v441 = vunpack.c.h.b16 %v421
      %v442 = vunpack.c.l.b16 %v422
      %v443 = vunpack.c.h.b16 %v422
      %v444 = vunpack.c.l.b16 %v423
      %v445 = vunpack.c.h.b16 %v423
      %v446 = vunpack.c.l.b16 %v424
      %v447 = vunpack.c.h.b16 %v424
      %v448 = vunpack.c.l.b16 %v425
      %v449 = vunpack.c.h.b16 %v425
      %v450 = vpack.c.b16 %v434, %v434
      %v451 = vpack.c.b16 %v435, %v435
      %v452 = vpack.c.b16 %v436, %v436
      %v453 = vpack.c.b16 %v437, %v437
      %v454 = vpack.c.b16 %v438, %v438
      %v455 = vpack.c.b16 %v439, %v439
      %v456 = vpack.c.b16 %v440, %v440
      %v457 = vpack.c.b16 %v441, %v441
      %v458 = vpack.c.b16 %v442, %v442
      %v459 = vpack.c.b16 %v443, %v443
      %v460 = vpack.c.b16 %v444, %v444
      %v461 = vpack.c.b16 %v445, %v445
      %v462 = vpack.c.b16 %v446, %v446
      %v463 = vpack.c.b16 %v447, %v447
      %v464 = vpack.c.b16 %v448, %v448
      %v465 = vpack.c.b16 %v449, %v449
      %482 = vst [vmem:[#allocation9] sm:$0xf] %v450
      %483 = vst [vmem:[#allocation9 + $0x4] sm:$0xf] %v451
      %484 = vst [vmem:[#allocation9 + $0x8] sm:$0xf] %v452
      %485 = vst [vmem:[#allocation9 + $0xc] sm:$0xf] %v453
      %486 = vst [vmem:[#allocation9 + $0x10] sm:$0xf] %v454
      %487 = vst [vmem:[#allocation9 + $0x14] sm:$0xf] %v455
      %488 = vst [vmem:[#allocation9 + $0x18] sm:$0xf] %v456
      %489 = vst [vmem:[#allocation9 + $0x1c] sm:$0xf] %v457
      %490 = vst [vmem:[#allocation9 + $0x20] sm:$0xf] %v458
      %491 = vst [vmem:[#allocation9 + $0x24] sm:$0xf] %v459
      %492 = vst [vmem:[#allocation9 + $0x28] sm:$0xf] %v460
      %493 = vst [vmem:[#allocation9 + $0x2c] sm:$0xf] %v461
      %494 = vst [vmem:[#allocation9 + $0x30] sm:$0xf] %v462
      %495 = vst [vmem:[#allocation9 + $0x34] sm:$0xf] %v463
      %496 = vst [vmem:[#allocation9 + $0x38] sm:$0xf] %v464
      %497 = vst [vmem:[#allocation9 + $0x3c] sm:$0xf] %v465
    $region33: #{tpu_custom_call.1} parent=1 // pred_fallthru
      _
    // Predicated region
    $region34: #{tpu_custom_call.1} parent=1 // pred_check
      _
    $region35: #{tpu_custom_call.1} parent=1 // pred_check_branch
      %499 = sbr.rel (0) target = $region37
    $region36: #{tpu_custom_call.1} parent=1 // pred_region
      %s501 = ssub.s32 1024, 1024
      %502 = vsyncadd [#allocation5], %s501
      %s503 = sshll.u32 [#allocation9], 4
      %s504 = int_to_ptr.vmem [resolvable:$true] %s503
      %509 = dma.vmem_to_hbm [thread:$0]  %s504, 1024, %s3, [#allocation5], 64, 64, 4
    $region37: #{tpu_custom_call.1} parent=1 // pred_fallthru
      _
    // Predicated region
    $region38: #{tpu_custom_call.1} parent=1 // pred_check
      _
    $region39: #{tpu_custom_call.1} parent=1 // pred_check_branch
      %511 = sbr.rel (0) target = $region41
    $region40: #{tpu_custom_call.1} parent=1 // pred_region
      %512 = dma.done [#allocation5], 1024
    $region41: #{tpu_custom_call.1} parent=1 // pred_fallthru
      _
    %513 = vsyncpa [#allocation4], 1
    %514 = vsyncpa [#allocation7], 1
    %515 = vsyncpa [#allocation5], 1

// kernel: tpu_custom_call.1
$region0: #{tpu_custom_call.1}
  #allocation0 [shape = 'u32[]', space=smem, size = 0x4, offset = 0x4, fixed_abs, tag = 'smem constant byte address 0x4 - core index']
  #allocation1 [shape = 'u32[144,128]{1,0:T(1,128)}', space=vmem, size = 0x12000, scoped, tag = 'internal scratch']
  #allocation2 [shape = 'f32[128,128]{1,0:T(8,128)}', space=vmem, size = 0x10000, scoped, tag = 'scratch operand']
  %s0 = inlined_call_operand.hbm [shape: f32[128,128], index: 0, kind: input, shape index: {}]
  %s1 = inlined_call_operand.hbm [shape: f32[128,128], index: 1, kind: input, shape index: {}]
  %s2 = inlined_call_operand.hbm [shape: f32[128,128], index: 2, kind: input, shape index: {}]
  %s3 = inlined_call_operand.hbm [shape: bf16[128,128], index: 3, kind: output, shape index: {}]
  %s4 = sld [smem:[#allocation0]]
  $region42: #{tpu_custom_call.1} parent=0
    _
  %s6 = ssub.s32 1, %s4
  %s7 = scalar_select 0, %s6, %s4
  $region1: #{tpu_custom_call.1} parent=0
    #allocation3 [shape = 'u8[65536]{0}', space=vmem, size = 0x10000, scoped, tag = 'input window, operand 0, single buffered']
    #allocation4 [shape = 's32[1]{0}', space=sflag, size = 0x4, scoped, tag = 'scoped memory for tpu_custom_call.1']
    #allocation5 [shape = 's32[1]{0}', space=sflag, size = 0x4, scoped, tag = 'scoped memory for tpu_custom_call.1']
    #allocation6 [shape = 'u8[65536]{0}', space=vmem, size = 0x10000, scoped, tag = 'input window, operand 1, single buffered']
    #allocation7 [shape = 's32[1]{0}', space=sflag, size = 0x4, scoped, tag = 'scoped memory for tpu_custom_call.1']
    #allocation8 [shape = 'u8[65536]{0}', space=vmem, size = 0x10000, scoped, tag = 'input window, operand 2, single buffered']
    #allocation9 [shape = 'u8[32768]{0}', space=vmem, size = 0x8000, scoped, tag = 'output window, operand 0, single buffered']
    %8 = vsyncpa [#allocation4], 0
    %9 = vsyncpa [#allocation7], 0
    %10 = vsyncpa [#allocation5], 0
    // Predicated region
    $region2: #{tpu_custom_call.1} parent=1 // pred_check
      _
    $region3: #{tpu_custom_call.1} parent=1 // pred_check_branch
      %12 = sbr.rel (0) target = $region5
    $region4: #{tpu_custom_call.1} parent=1 // pred_region
      %s14 = ssub.s32 2048, 2048
      %15 = vsyncadd [#allocation4], %s14
      %s16 = sshll.u32 [#allocation3], 4
      %s17 = int_to_ptr.vmem [resolvable:$true] %s16
      %22 = dma.hbm_to_vmem [thread:$0]  %s0, 2048, %s17, [#allocation4], 128, 128, 8
    $region5: #{tpu_custom_call.1} parent=1 // pred_fallthru
      _
    // Predicated region
    $region6: #{tpu_custom_call.1} parent=1 // pred_check
      _
    $region7: #{tpu_custom_call.1} parent=1 // pred_check_branch
      %24 = sbr.rel (0) target = $region9
    $region8: #{tpu_custom_call.1} parent=1 // pred_region
      %s26 = ssub.s32 2048, 2048
      %27 = vsyncadd [#allocation7], %s26
      %s28 = sshll.u32 [#allocation6], 4
      %s29 = int_to_ptr.vmem [resolvable:$true] %s28
      %34 = dma.hbm_to_vmem [thread:$0]  %s1, 2048, %s29, [#allocation7], 128, 128, 8
    $region9: #{tpu_custom_call.1} parent=1 // pred_fallthru
      _
    // Predicated region
    $region10: #{tpu_custom_call.1} parent=1 // pred_check
      _
    $region11: #{tpu_custom_call.1} parent=1 // pred_check_branch
      %36 = sbr.rel (0) target = $region13
    $region12: #{tpu_custom_call.1} parent=1 // pred_region
      %s38 = ssub.s32 2048, 2048
      %39 = vsyncadd [#allocation7], %s38
      %s40 = sshll.u32 [#allocation8], 4
      %s41 = int_to_ptr.vmem [resolvable:$true] %s40
      %46 = dma.hbm_to_vmem [thread:$0]  %s2, 2048, %s41, [#allocation7], 128, 128, 8
    $region13: #{tpu_custom_call.1} parent=1 // pred_fallthru
      _
    // Predicated region
    $region14: #{tpu_custom_call.1} parent=1 // pred_check
      _
    $region15: #{tpu_custom_call.1} parent=1 // pred_check_branch
      %48 = sbr.rel (0) target = $region17
    $region16: #{tpu_custom_call.1} parent=1 // pred_region
      %49 = dma.done [#allocation4], 2048
    $region17: #{tpu_custom_call.1} parent=1 // pred_fallthru
      _
    // Predicated region
    $region18: #{tpu_custom_call.1} parent=1 // pred_check
      _
    $region19: #{tpu_custom_call.1} parent=1 // pred_check_branch
      %51 = sbr.rel (0) target = $region21
    $region20: #{tpu_custom_call.1} parent=1 // pred_region
      %52 = dma.done [#allocation7], 2048
    $region21: #{tpu_custom_call.1} parent=1 // pred_fallthru
      _
    // Predicated region
    $region22: #{tpu_custom_call.1} parent=1 // pred_check
      _
    $region23: #{tpu_custom_call.1} parent=1 // pred_check_branch
      %54 = sbr.rel (0) target = $region25
    $region24: #{tpu_custom_call.1} parent=1 // pred_region
      %55 = dma.done [#allocation7], 2048
    $region25: #{tpu_custom_call.1} parent=1 // pred_fallthru
      _
    %p57 = scmp.eq.s32.totalorder 0, 0
    // Predicated region
    $region26: #{tpu_custom_call.1} parent=1 // pred_check
      %p58 = pneg %p57
    $region27: #{tpu_custom_call.1} parent=1 // pred_check_branch
      %60 = sbr.rel (%p58) target = $region29
    $region28: #{tpu_custom_call.1} parent=1 // pred_region
      %61 = vst [vmem:[#allocation2] sm:$0xff] 0.0
      %62 = vst [vmem:[#allocation2 + $0x8] sm:$0xff] 0.0
      %63 = vst [vmem:[#allocation2 + $0x10] sm:$0xff] 0.0
      %64 = vst [vmem:[#allocation2 + $0x18] sm:$0xff] 0.0
      %65 = vst [vmem:[#allocation2 + $0x20] sm:$0xff] 0.0
      %66 = vst [vmem:[#allocation2 + $0x28] sm:$0xff] 0.0
      %67 = vst [vmem:[#allocation2 + $0x30] sm:$0xff] 0.0
      %68 = vst [vmem:[#allocation2 + $0x38] sm:$0xff] 0.0
      %69 = vst [vmem:[#allocation2 + $0x40] sm:$0xff] 0.0
      %70 = vst [vmem:[#allocation2 + $0x48] sm:$0xff] 0.0
      %71 = vst [vmem:[#allocation2 + $0x50] sm:$0xff] 0.0
      %72 = vst [vmem:[#allocation2 + $0x58] sm:$0xff] 0.0
      %73 = vst [vmem:[#allocation2 + $0x60] sm:$0xff] 0.0
      %74 = vst [vmem:[#allocation2 + $0x68] sm:$0xff] 0.0
      %75 = vst [vmem:[#allocation2 + $0x70] sm:$0xff] 0.0
      %76 = vst [vmem:[#allocation2 + $0x78] sm:$0xff] 0.0
    $region29: #{tpu_custom_call.1} parent=1 // pred_fallthru
      _
    %v77 = vld [vmem:[#allocation3] sm:$0xff]
    %v78 = vld [vmem:[#allocation3 + $0x8] sm:$0xff]
    %v79 = vld [vmem:[#allocation3 + $0x10] sm:$0xff]
    %v80 = vld [vmem:[#allocation3 + $0x18] sm:$0xff]
    %v81 = vld [vmem:[#allocation3 + $0x20] sm:$0xff]
    %v82 = vld [vmem:[#allocation3 + $0x28] sm:$0xff]
    %v83 = vld [vmem:[#allocation3 + $0x30] sm:$0xff]
    %v84 = vld [vmem:[#allocation3 + $0x38] sm:$0xff]
    %v85 = vld [vmem:[#allocation3 + $0x40] sm:$0xff]
    %v86 = vld [vmem:[#allocation3 + $0x48] sm:$0xff]
    %v87 = vld [vmem:[#allocation3 + $0x50] sm:$0xff]
    %v88 = vld [vmem:[#allocation3 + $0x58] sm:$0xff]
    %v89 = vld [vmem:[#allocation3 + $0x60] sm:$0xff]
    %v90 = vld [vmem:[#allocation3 + $0x68] sm:$0xff]
    %v91 = vld [vmem:[#allocation3 + $0x70] sm:$0xff]
    %v92 = vld [vmem:[#allocation3 + $0x78] sm:$0xff]
    %v93 = vpack.c.bf16 %v78, %v77
    %v94 = vpack.c.bf16 %v80, %v79
    %v95 = vpack.c.bf16 %v82, %v81
    %v96 = vpack.c.bf16 %v84, %v83
    %v97 = vpack.c.bf16 %v86, %v85
    %v98 = vpack.c.bf16 %v88, %v87
    %v99 = vpack.c.bf16 %v90, %v89
    %v100 = vpack.c.bf16 %v92, %v91
    %v101 = vld [vmem:[#allocation6] sm:$0xff]
    %v102 = vld [vmem:[#allocation6 + $0x8] sm:$0xff]
    %v103 = vld [vmem:[#allocation6 + $0x10] sm:$0xff]
    %v104 = vld [vmem:[#allocation6 + $0x18] sm:$0xff]
    %v105 = vld [vmem:[#allocation6 + $0x20] sm:$0xff]
    %v106 = vld [vmem:[#allocation6 + $0x28] sm:$0xff]
    %v107 = vld [vmem:[#allocation6 + $0x30] sm:$0xff]
    %v108 = vld [vmem:[#allocation6 + $0x38] sm:$0xff]
    %v109 = vld [vmem:[#allocation6 + $0x40] sm:$0xff]
    %v110 = vld [vmem:[#allocation6 + $0x48] sm:$0xff]
    %v111 = vld [vmem:[#allocation6 + $0x50] sm:$0xff]
    %v112 = vld [vmem:[#allocation6 + $0x58] sm:$0xff]
    %v113 = vld [vmem:[#allocation6 + $0x60] sm:$0xff]
    %v114 = vld [vmem:[#allocation6 + $0x68] sm:$0xff]
    %v115 = vld [vmem:[#allocation6 + $0x70] sm:$0xff]
    %v116 = vld [vmem:[#allocation6 + $0x78] sm:$0xff]
    %v117 = vpack.c.bf16 %v102, %v101
    %v118 = vpack.c.bf16 %v104, %v103
    %v119 = vpack.c.bf16 %v106, %v105
    %v120 = vpack.c.bf16 %v108, %v107
    %v121 = vpack.c.bf16 %v110, %v109
    %v122 = vpack.c.bf16 %v112, %v111
    %v123 = vpack.c.bf16 %v114, %v113
    %v124 = vpack.c.bf16 %v116, %v115
    %125 = vmatprep.subr.bf16.mxu0 0
    %126 = vmatpush1.bf16.msra.mxu0 %v117
    %127 = vmatprep.subr.bf16.mxu0 0
    %128 = vmatpush1.bf16.msra.mxu0 %v118
    %129 = vmatprep.subr.bf16.mxu0 0
    %130 = vmatpush1.bf16.msra.mxu0 %v119
    %131 = vmatprep.subr.bf16.mxu0 0
    %132 = vmatpush1.bf16.msra.mxu0 %v120
    %133 = vmatprep.subr.bf16.mxu0 0
    %134 = vmatpush1.bf16.msra.mxu0 %v121
    %135 = vmatprep.subr.bf16.mxu0 0
    %136 = vmatpush1.bf16.msra.mxu0 %v122
    %137 = vmatprep.subr.bf16.mxu0 0
    %138 = vmatpush1.bf16.msra.mxu0 %v123
    %139 = vmatprep.subr.bf16.mxu0 0
    %140 = vmatpush1.bf16.msra.mxu0 %v124
    %141 = vmatprep.subr.bf16.mxu0 0
    %142 = vmatpush1.bf16.msra.mxu0 0
    %143 = vmatprep.subr.bf16.mxu0 0
    %144 = vmatpush1.bf16.msra.mxu0 0
    %145 = vmatprep.subr.bf16.mxu0 0
    %146 = vmatpush1.bf16.msra.mxu0 0
    %147 = vmatprep.subr.bf16.mxu0 0
    %148 = vmatpush1.bf16.msra.mxu0 0
    %149 = vmatprep.subr.bf16.mxu0 0
    %150 = vmatpush1.bf16.msra.mxu0 0
    %151 = vmatprep.subr.bf16.mxu0 0
    %152 = vmatpush1.bf16.msra.mxu0 0
    %153 = vmatprep.subr.bf16.mxu0 0
    %154 = vmatpush1.bf16.msra.mxu0 0
    %155 = vmatprep.subr.bf16.mxu0 0
    %156 = vmatpush1.bf16.msra.mxu0 0
    %157 = vmatprep.mubr.bf16.mxu0 0
    %158 = vmatmul.mubr.bf16.gmra.mrb[0].mxu0 %v93
    %v159 = vpop.f32.mrb[0].mxu0
    %v160 = vadd.f32 0.0, %v159
    %v161 = vpop.f32.mrb[0].mxu0
    %v162 = vpop.f32.mrb[0].mxu0
    %v163 = vadd.f32 0.0, %v162
    %v164 = vpop.f32.mrb[0].mxu0
    %165 = vmatprep.mubr.bf16.mxu0 0
    %166 = vmatmul.mubr.bf16.gmra.mrb[0].mxu0 %v94
    %v167 = vpop.f32.mrb[0].mxu0
    %v168 = vadd.f32 0.0, %v167
    %v169 = vpop.f32.mrb[0].mxu0
    %v170 = vpop.f32.mrb[0].mxu0
    %v171 = vadd.f32 0.0, %v170
    %v172 = vpop.f32.mrb[0].mxu0
    %173 = vmatprep.mubr.bf16.mxu0 0
    %174 = vmatmul.mubr.bf16.gmra.mrb[0].mxu0 %v95
    %v175 = vpop.f32.mrb[0].mxu0
    %v176 = vadd.f32 0.0, %v175
    %v177 = vpop.f32.mrb[0].mxu0
    %v178 = vpop.f32.mrb[0].mxu0
    %v179 = vadd.f32 0.0, %v178
    %v180 = vpop.f32.mrb[0].mxu0
    %181 = vmatprep.mubr.bf16.mxu0 0
    %182 = vmatmul.mubr.bf16.gmra.mrb[0].mxu0 %v96
    %v183 = vpop.f32.mrb[0].mxu0
    %v184 = vadd.f32 0.0, %v183
    %v185 = vpop.f32.mrb[0].mxu0
    %v186 = vpop.f32.mrb[0].mxu0
    %v187 = vadd.f32 0.0, %v186
    %v188 = vpop.f32.mrb[0].mxu0
    %189 = vmatprep.mubr.bf16.mxu0 0
    %190 = vmatmul.mubr.bf16.gmra.mrb[0].mxu0 %v97
    %v191 = vpop.f32.mrb[0].mxu0
    %v192 = vadd.f32 0.0, %v191
    %v193 = vpop.f32.mrb[0].mxu0
    %v194 = vpop.f32.mrb[0].mxu0
    %v195 = vadd.f32 0.0, %v194
    %v196 = vpop.f32.mrb[0].mxu0
    %197 = vmatprep.mubr.bf16.mxu0 0
    %198 = vmatmul.mubr.bf16.gmra.mrb[0].mxu0 %v98
    %v199 = vpop.f32.mrb[0].mxu0
    %v200 = vadd.f32 0.0, %v199
    %v201 = vpop.f32.mrb[0].mxu0
    %v202 = vpop.f32.mrb[0].mxu0
    %v203 = vadd.f32 0.0, %v202
    %v204 = vpop.f32.mrb[0].mxu0
    %205 = vmatprep.mubr.bf16.mxu0 0
    %206 = vmatmul.mubr.bf16.gmra.mrb[0].mxu0 %v99
    %v207 = vpop.f32.mrb[0].mxu0
    %v208 = vadd.f32 0.0, %v207
    %v209 = vpop.f32.mrb[0].mxu0
    %v210 = vpop.f32.mrb[0].mxu0
    %v211 = vadd.f32 0.0, %v210
    %v212 = vpop.f32.mrb[0].mxu0
    %213 = vmatprep.mubr.bf16.mxu0 0
    %214 = vmatmul.mubr.bf16.gmra.mrb[0].mxu0 %v100
    %v215 = vpop.f32.mrb[0].mxu0
    %v216 = vadd.f32 0.0, %v215
    %v217 = vpop.f32.mrb[0].mxu0
    %v218 = vpop.f32.mrb[0].mxu0
    %v219 = vadd.f32 0.0, %v218
    %v220 = vpop.f32.mrb[0].mxu0
    %221 = vdwg.mxu0
    %v222 = vld [vmem:[#allocation2] sm:$0xff]
    %v223 = vld [vmem:[#allocation2 + $0x8] sm:$0xff]
    %v224 = vld [vmem:[#allocation2 + $0x10] sm:$0xff]
    %v225 = vld [vmem:[#allocation2 + $0x18] sm:$0xff]
    %v226 = vld [vmem:[#allocation2 + $0x20] sm:$0xff]
    %v227 = vld [vmem:[#allocation2 + $0x28] sm:$0xff]
    %v228 = vld [vmem:[#allocation2 + $0x30] sm:$0xff]
    %v229 = vld [vmem:[#allocation2 + $0x38] sm:$0xff]
    %v230 = vld [vmem:[#allocation2 + $0x40] sm:$0xff]
    %v231 = vld [vmem:[#allocation2 + $0x48] sm:$0xff]
    %v232 = vld [vmem:[#allocation2 + $0x50] sm:$0xff]
    %v233 = vld [vmem:[#allocation2 + $0x58] sm:$0xff]
    %v234 = vld [vmem:[#allocation2 + $0x60] sm:$0xff]
    %v235 = vld [vmem:[#allocation2 + $0x68] sm:$0xff]
    %v236 = vld [vmem:[#allocation2 + $0x70] sm:$0xff]
    %v237 = vld [vmem:[#allocation2 + $0x78] sm:$0xff]
    %v238 = vld [vmem:[#allocation8] sm:$0xff]
    %v239 = vld [vmem:[#allocation8 + $0x8] sm:$0xff]
    %v240 = vld [vmem:[#allocation8 + $0x10] sm:$0xff]
    %v241 = vld [vmem:[#allocation8 + $0x18] sm:$0xff]
    %v242 = vld [vmem:[#allocation8 + $0x20] sm:$0xff]
    %v243 = vld [vmem:[#allocation8 + $0x28] sm:$0xff]
    %v244 = vld [vmem:[#allocation8 + $0x30] sm:$0xff]
    %v245 = vld [vmem:[#allocation8 + $0x38] sm:$0xff]
    %v246 = vld [vmem:[#allocation8 + $0x40] sm:$0xff]
    %v247 = vld [vmem:[#allocation8 + $0x48] sm:$0xff]
    %v248 = vld [vmem:[#allocation8 + $0x50] sm:$0xff]
    %v249 = vld [vmem:[#allocation8 + $0x58] sm:$0xff]
    %v250 = vld [vmem:[#allocation8 + $0x60] sm:$0xff]
    %v251 = vld [vmem:[#allocation8 + $0x68] sm:$0xff]
    %v252 = vld [vmem:[#allocation8 + $0x70] sm:$0xff]
    %v253 = vld [vmem:[#allocation8 + $0x78] sm:$0xff]
    %v254 = vpack.c.bf16 %v239, %v238
    %v255 = vpack.c.bf16 %v241, %v240
    %v256 = vpack.c.bf16 %v243, %v242
    %v257 = vpack.c.bf16 %v245, %v244
    %v258 = vpack.c.bf16 %v247, %v246
    %v259 = vpack.c.bf16 %v249, %v248
    %v260 = vpack.c.bf16 %v251, %v250
    %v261 = vpack.c.bf16 %v253, %v252
    %v262 = vpack.c.bf16 %v163, %v160
    %v263 = vpack.c.bf16 %v171, %v168
    %v264 = vpack.c.bf16 %v179, %v176
    %v265 = vpack.c.bf16 %v187, %v184
    %v266 = vpack.c.bf16 %v195, %v192
    %v267 = vpack.c.bf16 %v203, %v200
    %v268 = vpack.c.bf16 %v211, %v208
    %v269 = vpack.c.bf16 %v219, %v216
    %270 = vmatprep.subr.bf16.mxu0 0
    %271 = vmatpush1.bf16.msra.mxu0 %v262
    %272 = vmatprep.subr.bf16.mxu0 0
    %273 = vmatpush1.bf16.msra.mxu0 %v263
    %274 = vmatprep.subr.bf16.mxu0 0
    %275 = vmatpush1.bf16.msra.mxu0 %v264
    %276 = vmatprep.subr.bf16.mxu0 0
    %277 = vmatpush1.bf16.msra.mxu0 %v265
    %278 = vmatprep.subr.bf16.mxu0 0
    %279 = vmatpush1.bf16.msra.mxu0 %v266
    %280 = vmatprep.subr.bf16.mxu0 0
    %281 = vmatpush1.bf16.msra.mxu0 %v267
    %282 = vmatprep.subr.bf16.mxu0 0
    %283 = vmatpush1.bf16.msra.mxu0 %v268
    %284 = vmatprep.subr.bf16.mxu0 0
    %285 = vmatpush1.bf16.msra.mxu0 %v269
    %286 = vmatprep.subr.bf16.mxu0 0
    %287 = vmatpush1.bf16.msra.mxu0 0
    %288 = vmatprep.subr.bf16.mxu0 0
    %289 = vmatpush1.bf16.msra.mxu0 0
    %290 = vmatprep.subr.bf16.mxu0 0
    %291 = vmatpush1.bf16.msra.mxu0 0
    %292 = vmatprep.subr.bf16.mxu0 0
    %293 = vmatpush1.bf16.msra.mxu0 0
    %294 = vmatprep.subr.bf16.mxu0 0
    %295 = vmatpush1.bf16.msra.mxu0 0
    %296 = vmatprep.subr.bf16.mxu0 0
    %297 = vmatpush1.bf16.msra.mxu0 0
    %298 = vmatprep.subr.bf16.mxu0 0
    %299 = vmatpush1.bf16.msra.mxu0 0
    %300 = vmatprep.subr.bf16.mxu0 0
    %301 = vmatpush1.bf16.msra.mxu0 0
    %302 = vmatprep.mubr.bf16.mxu0 0
    %303 = vmatmul.mubr.bf16.gmra.mrb[0].mxu0 %v254
    %v304 = vpop.f32.mrb[0].mxu0
    %v305 = vadd.f32 0.0, %v304
    %v306 = vpop.f32.mrb[0].mxu0
    %v307 = vpop.f32.mrb[0].mxu0
    %v308 = vadd.f32 0.0, %v307
    %v309 = vpop.f32.mrb[0].mxu0
    %310 = vmatprep.mubr.bf16.mxu0 0
    %311 = vmatmul.mubr.bf16.gmra.mrb[0].mxu0 %v255
    %v312 = vpop.f32.mrb[0].mxu0
    %v313 = vadd.f32 0.0, %v312
    %v314 = vpop.f32.mrb[0].mxu0
    %v315 = vpop.f32.mrb[0].mxu0
    %v316 = vadd.f32 0.0, %v315
    %v317 = vpop.f32.mrb[0].mxu0
    %318 = vmatprep.mubr.bf16.mxu0 0
    %319 = vmatmul.mubr.bf16.gmra.mrb[0].mxu0 %v256
    %v320 = vpop.f32.mrb[0].mxu0
    %v321 = vadd.f32 0.0, %v320
    %v322 = vpop.f32.mrb[0].mxu0
    %v323 = vpop.f32.mrb[0].mxu0
    %v324 = vadd.f32 0.0, %v323
    %v325 = vpop.f32.mrb[0].mxu0
    %326 = vmatprep.mubr.bf16.mxu0 0
    %327 = vmatmul.mubr.bf16.gmra.mrb[0].mxu0 %v257
    %v328 = vpop.f32.mrb[0].mxu0
    %v329 = vadd.f32 0.0, %v328
    %v330 = vpop.f32.mrb[0].mxu0
    %v331 = vpop.f32.mrb[0].mxu0
    %v332 = vadd.f32 0.0, %v331
    %v333 = vpop.f32.mrb[0].mxu0
    %334 = vmatprep.mubr.bf16.mxu0 0
    %335 = vmatmul.mubr.bf16.gmra.mrb[0].mxu0 %v258
    %v336 = vpop.f32.mrb[0].mxu0
    %v337 = vadd.f32 0.0, %v336
    %v338 = vpop.f32.mrb[0].mxu0
    %v339 = vpop.f32.mrb[0].mxu0
    %v340 = vadd.f32 0.0, %v339
    %v341 = vpop.f32.mrb[0].mxu0
    %342 = vmatprep.mubr.bf16.mxu0 0
    %343 = vmatmul.mubr.bf16.gmra.mrb[0].mxu0 %v259
    %v344 = vpop.f32.mrb[0].mxu0
    %v345 = vadd.f32 0.0, %v344
    %v346 = vpop.f32.mrb[0].mxu0
    %v347 = vpop.f32.mrb[0].mxu0
    %v348 = vadd.f32 0.0, %v347
    %v349 = vpop.f32.mrb[0].mxu0
    %350 = vmatprep.mubr.bf16.mxu0 0
    %351 = vmatmul.mubr.bf16.gmra.mrb[0].mxu0 %v260
    %v352 = vpop.f32.mrb[0].mxu0
    %v353 = vadd.f32 0.0, %v352
    %v354 = vpop.f32.mrb[0].mxu0
    %v355 = vpop.f32.mrb[0].mxu0
    %v356 = vadd.f32 0.0, %v355
    %v357 = vpop.f32.mrb[0].mxu0
    %358 = vmatprep.mubr.bf16.mxu0 0
    %359 = vmatmul.mubr.bf16.gmra.mrb[0].mxu0 %v261
    %v360 = vpop.f32.mrb[0].mxu0
    %v361 = vadd.f32 0.0, %v360
    %v362 = vpop.f32.mrb[0].mxu0
    %v363 = vpop.f32.mrb[0].mxu0
    %v364 = vadd.f32 0.0, %v363
    %v365 = vpop.f32.mrb[0].mxu0
    %366 = vdwg.mxu0
    %v367 = vadd.f32 %v222, %v305
    %v368 = vadd.f32 %v223, %v308
    %v369 = vadd.f32 %v224, %v313
    %v370 = vadd.f32 %v225, %v316
    %v371 = vadd.f32 %v226, %v321
    %v372 = vadd.f32 %v227, %v324
    %v373 = vadd.f32 %v228, %v329
    %v374 = vadd.f32 %v229, %v332
    %v375 = vadd.f32 %v230, %v337
    %v376 = vadd.f32 %v231, %v340
    %v377 = vadd.f32 %v232, %v345
    %v378 = vadd.f32 %v233, %v348
    %v379 = vadd.f32 %v234, %v353
    %v380 = vadd.f32 %v235, %v356
    %v381 = vadd.f32 %v236, %v361
    %v382 = vadd.f32 %v237, %v364
    %383 = vst [vmem:[#allocation2] sm:$0xff] %v367
    %384 = vst [vmem:[#allocation2 + $0x8] sm:$0xff] %v368
    %385 = vst [vmem:[#allocation2 + $0x10] sm:$0xff] %v369
    %386 = vst [vmem:[#allocation2 + $0x18] sm:$0xff] %v370
    %387 = vst [vmem:[#allocation2 + $0x20] sm:$0xff] %v371
    %388 = vst [vmem:[#allocation2 + $0x28] sm:$0xff] %v372
    %389 = vst [vmem:[#allocation2 + $0x30] sm:$0xff] %v373
    %390 = vst [vmem:[#allocation2 + $0x38] sm:$0xff] %v374
    %391 = vst [vmem:[#allocation2 + $0x40] sm:$0xff] %v375
    %392 = vst [vmem:[#allocation2 + $0x48] sm:$0xff] %v376
    %393 = vst [vmem:[#allocation2 + $0x50] sm:$0xff] %v377
    %394 = vst [vmem:[#allocation2 + $0x58] sm:$0xff] %v378
    %395 = vst [vmem:[#allocation2 + $0x60] sm:$0xff] %v379
    %396 = vst [vmem:[#allocation2 + $0x68] sm:$0xff] %v380
    %397 = vst [vmem:[#allocation2 + $0x70] sm:$0xff] %v381
    %398 = vst [vmem:[#allocation2 + $0x78] sm:$0xff] %v382
    // Predicated region
    $region30: #{tpu_custom_call.1} parent=1 // pred_check
      %p399 = pneg %p57
    $region31: #{tpu_custom_call.1} parent=1 // pred_check_branch
      %401 = sbr.rel (%p399) target = $region33
    $region32: #{tpu_custom_call.1} parent=1 // pred_region
      %v402 = vld [vmem:[#allocation2] sm:$0xff]
      %v403 = vld [vmem:[#allocation2 + $0x8] sm:$0xff]
      %v404 = vld [vmem:[#allocation2 + $0x10] sm:$0xff]
      %v405 = vld [vmem:[#allocation2 + $0x18] sm:$0xff]
      %v406 = vld [vmem:[#allocation2 + $0x20] sm:$0xff]
      %v407 = vld [vmem:[#allocation2 + $0x28] sm:$0xff]
      %v408 = vld [vmem:[#allocation2 + $0x30] sm:$0xff]
      %v409 = vld [vmem:[#allocation2 + $0x38] sm:$0xff]
      %v410 = vld [vmem:[#allocation2 + $0x40] sm:$0xff]
      %v411 = vld [vmem:[#allocation2 + $0x48] sm:$0xff]
      %v412 = vld [vmem:[#allocation2 + $0x50] sm:$0xff]
      %v413 = vld [vmem:[#allocation2 + $0x58] sm:$0xff]
      %v414 = vld [vmem:[#allocation2 + $0x60] sm:$0xff]
      %v415 = vld [vmem:[#allocation2 + $0x68] sm:$0xff]
      %v416 = vld [vmem:[#allocation2 + $0x70] sm:$0xff]
      %v417 = vld [vmem:[#allocation2 + $0x78] sm:$0xff]
      %v418 = vpack.c.bf16 %v403, %v402
      %v419 = vpack.c.bf16 %v405, %v404
      %v420 = vpack.c.bf16 %v407, %v406
      %v421 = vpack.c.bf16 %v409, %v408
      %v422 = vpack.c.bf16 %v411, %v410
      %v423 = vpack.c.bf16 %v413, %v412
      %v424 = vpack.c.bf16 %v415, %v414
      %v425 = vpack.c.bf16 %v417, %v416
      %v434 = vunpack.c.l.b16 %v418
      %v435 = vunpack.c.h.b16 %v418
      %v436 = vunpack.c.l.b16 %v419
      %v437 = vunpack.c.h.b16 %v419
      %v438 = vunpack.c.l.b16 %v420
      %v439 = vunpack.c.h.b16 %v420
      %v440 = vunpack.c.l.b16 %v421
      %v441 = vunpack.c.h.b16 %v421
      %v442 = vunpack.c.l.b16 %v422
      %v443 = vunpack.c.h.b16 %v422
      %v444 = vunpack.c.l.b16 %v423
      %v445 = vunpack.c.h.b16 %v423
      %v446 = vunpack.c.l.b16 %v424
      %v447 = vunpack.c.h.b16 %v424
      %v448 = vunpack.c.l.b16 %v425
      %v449 = vunpack.c.h.b16 %v425
      %v450 = vpack.c.b16 %v434, %v434
      %v451 = vpack.c.b16 %v435, %v435
      %v452 = vpack.c.b16 %v436, %v436
      %v453 = vpack.c.b16 %v437, %v437
      %v454 = vpack.c.b16 %v438, %v438
      %v455 = vpack.c.b16 %v439, %v439
      %v456 = vpack.c.b16 %v440, %v440
      %v457 = vpack.c.b16 %v441, %v441
      %v458 = vpack.c.b16 %v442, %v442
      %v459 = vpack.c.b16 %v443, %v443
      %v460 = vpack.c.b16 %v444, %v444
      %v461 = vpack.c.b16 %v445, %v445
      %v462 = vpack.c.b16 %v446, %v446
      %v463 = vpack.c.b16 %v447, %v447
      %v464 = vpack.c.b16 %v448, %v448
      %v465 = vpack.c.b16 %v449, %v449
      %482 = vst [vmem:[#allocation9] sm:$0xf] %v450
      %483 = vst [vmem:[#allocation9 + $0x4] sm:$0xf] %v451
      %484 = vst [vmem:[#allocation9 + $0x8] sm:$0xf] %v452
      %485 = vst [vmem:[#allocation9 + $0xc] sm:$0xf] %v453
      %486 = vst [vmem:[#allocation9 + $0x10] sm:$0xf] %v454
      %487 = vst [vmem:[#allocation9 + $0x14] sm:$0xf] %v455
      %488 = vst [vmem:[#allocation9 + $0x18] sm:$0xf] %v456
      %489 = vst [vmem:[#allocation9 + $0x1c] sm:$0xf] %v457
      %490 = vst [vmem:[#allocation9 + $0x20] sm:$0xf] %v458
      %491 = vst [vmem:[#allocation9 + $0x24] sm:$0xf] %v459
      %492 = vst [vmem:[#allocation9 + $0x28] sm:$0xf] %v460
      %493 = vst [vmem:[#allocation9 + $0x2c] sm:$0xf] %v461
      %494 = vst [vmem:[#allocation9 + $0x30] sm:$0xf] %v462
      %495 = vst [vmem:[#allocation9 + $0x34] sm:$0xf] %v463
      %496 = vst [vmem:[#allocation9 + $0x38] sm:$0xf] %v464
      %497 = vst [vmem:[#allocation9 + $0x3c] sm:$0xf] %v465
    $region33: #{tpu_custom_call.1} parent=1 // pred_fallthru
      _
    // Predicated region
    $region34: #{tpu_custom_call.1} parent=1 // pred_check
      _
    $region35: #{tpu_custom_call.1} parent=1 // pred_check_branch
      %499 = sbr.rel (0) target = $region37
    $region36: #{tpu_custom_call.1} parent=1 // pred_region
      %s501 = ssub.s32 1024, 1024
      %502 = vsyncadd [#allocation5], %s501
      %s503 = sshll.u32 [#allocation9], 4
      %s504 = int_to_ptr.vmem [resolvable:$true] %s503
      %509 = dma.vmem_to_hbm [thread:$0]  %s504, 1024, %s3, [#allocation5], 64, 64, 4
    $region37: #{tpu_custom_call.1} parent=1 // pred_fallthru
      _
    // Predicated region
    $region38: #{tpu_custom_call.1} parent=1 // pred_check
      _
    $region39: #{tpu_custom_call.1} parent=1 // pred_check_branch
      %511 = sbr.rel (0) target = $region41
    $region40: #{tpu_custom_call.1} parent=1 // pred_region
      %512 = dma.done [#allocation5], 1024
    $region41: #{tpu_custom_call.1} parent=1 // pred_fallthru
      _
    %513 = vsyncpa [#allocation4], 1
    %514 = vsyncpa [#allocation7], 1
    %515 = vsyncpa [#allocation5], 1

</llo_original>
